<compile_context>
chip_gen: v7x
topology: tpu7x:2x2x1
jax: 0.10.0
libtpu: 0.0.40
codegen_flags: <defaults>
</compile_context>

<pallas_src>
import functools
import math

import jax
import jax.numpy as jnp
from jax.experimental import pallas as pl
from jax.experimental.pallas import tpu as pltpu


# ----------------------------- tiling helpers ------------------------------ #

def _pick_tile(dim, preferred, granule):
    """Largest tile <= `preferred` that is a multiple of `granule` and divides
    `dim`; falls back to the full dimension (valid per the (8,128) rule)."""
    if dim <= preferred:
        return dim
    t = (preferred // granule) * granule
    while t >= granule:
        if dim % t == 0:
            return t
        t -= granule
    return dim


# ----------------------------- Pallas kernels ------------------------------ #

def _matmul_kernel(x_ref, w_ref, b_ref, o_ref, acc_ref, *, activation):
    """One (tm,tn) output tile; K axis is the innermost ('arbitrary') grid axis.
    Operands bf16, accumulation f32, fused bias + activation epilogue."""
    @pl.when(pl.program_id(2) == 0)
    def _():
        acc_ref[...] = jnp.zeros_like(acc_ref)

    acc_ref[...] += jnp.dot(x_ref[...], w_ref[...],
                            preferred_element_type=jnp.float32)

    @pl.when(pl.program_id(2) == pl.num_programs(2) - 1)
    def _():
        y = acc_ref[...] + b_ref[...]
        if activation == "gelu":
            # TODO(synk): HF BERT default is exact erf GELU; tanh approximation
            # kept since erf lowering in Mosaic is not guaranteed.
            y = jax.nn.gelu(y, approximate=True)
        elif activation == "tanh":
            y = jnp.tanh(y)
        o_ref[...] = y.astype(o_ref.dtype)


def _matmul_res_ln_kernel(x_ref, w_ref, b_ref, r_ref, g_ref, bb_ref,
                          o_ref, acc_ref, *, eps):
    """Matmul with fused (bias + residual-add + LayerNorm) finalize epilogue.
    Requires tn == N so the epilogue sees whole feature rows."""
    @pl.when(pl.program_id(2) == 0)
    def _():
        acc_ref[...] = jnp.zeros_like(acc_ref)

    acc_ref[...] += jnp.dot(x_ref[...], w_ref[...],
                            preferred_element_type=jnp.float32)

    @pl.when(pl.program_id(2) == pl.num_programs(2) - 1)
    def _():
        y = acc_ref[...] + b_ref[...] + r_ref[...].astype(jnp.float32)
        mu = jnp.mean(y, axis=-1, keepdims=True)
        var = jnp.mean((y - mu) * (y - mu), axis=-1, keepdims=True)
        yn = (y - mu) * jax.lax.rsqrt(var + eps)
        o_ref[...] = (yn * g_ref[...] + bb_ref[...]).astype(o_ref.dtype)


def linear(x, w, b, activation=None, out_dtype=jnp.bfloat16,
           tm=256, tn=512, tk=2048):
    """y = act(x @ w + b).  x: (M, K), w: (K, N), b: (1, N).  bf16 operands,
    f32 accumulation, tiled + auto-pipelined."""
    M, K = x.shape
    N = w.shape[1]
    x = x.astype(jnp.bfloat16)
    w = w.astype(jnp.bfloat16)
    tm = _pick_tile(M, tm, 16)     # bf16 packs 2 rows / sublane -> granule 16
    tn = _pick_tile(N, tn, 128)    # lane granularity
    tk = _pick_tile(K, tk, 128)
    # TODO(synk): on v6e (128 MiB VMEM) bump vmem_limit_bytes and use tk = K for
    # the FFN matmuls to drop the accumulator-revisit axis entirely.
    grid = (M // tm, N // tn, K // tk)
    return pl.pallas_call(
        functools.partial(_matmul_kernel, activation=activation),
        out_shape=jax.ShapeDtypeStruct((M, N), out_dtype),
        grid_spec=pltpu.PrefetchScalarGridSpec(
            num_scalar_prefetch=0,
            grid=grid,
            in_specs=[
                pl.BlockSpec((tm, tk), lambda i, j, k: (i, k)),
                pl.BlockSpec((tk, tn), lambda i, j, k: (k, j)),
                pl.BlockSpec((1, tn), lambda i, j, k: (0, j)),
            ],
            out_specs=pl.BlockSpec((tm, tn), lambda i, j, k: (i, j)),
            scratch_shapes=[pltpu.VMEM((tm, tn), jnp.float32)],
        ),
        compiler_params=pltpu.CompilerParams(
            dimension_semantics=("parallel", "parallel", "arbitrary")),
        cost_estimate=pl.CostEstimate(
            flops=2 * M * N * K,
            transcendentals=0,
            bytes_accessed=2 * (M * K + K * N + M * N) + 4 * N),
    )(x, w, b)


def linear_res_ln(x, w, b, residual, gamma, beta, eps=1e-12,
                  out_dtype=jnp.bfloat16, tm=256, tk=2048):
    """y = LayerNorm((x @ w + b) + residual) * gamma + beta, fused in one kernel.
    tn is forced to N so the LN epilogue sees whole rows."""
    M, K = x.shape
    N = w.shape[1]
    x = x.astype(jnp.bfloat16)
    w = w.astype(jnp.bfloat16)
    tm = _pick_tile(M, tm, 16)
    tk = _pick_tile(K, tk, 128)
    tn = N
    grid = (M // tm, 1, K // tk)
    return pl.pallas_call(
        functools.partial(_matmul_res_ln_kernel, eps=eps),
        out_shape=jax.ShapeDtypeStruct((M, N), out_dtype),
        grid_spec=pltpu.PrefetchScalarGridSpec(
            num_scalar_prefetch=0,
            grid=grid,
            in_specs=[
                pl.BlockSpec((tm, tk), lambda i, j, k: (i, k)),
                pl.BlockSpec((tk, tn), lambda i, j, k: (k, j)),
                pl.BlockSpec((1, tn), lambda i, j, k: (0, j)),
                pl.BlockSpec((tm, tn), lambda i, j, k: (i, j)),   # residual
                pl.BlockSpec((1, tn), lambda i, j, k: (0, j)),    # gamma
                pl.BlockSpec((1, tn), lambda i, j, k: (0, j)),    # beta
            ],
            out_specs=pl.BlockSpec((tm, tn), lambda i, j, k: (i, j)),
            scratch_shapes=[pltpu.VMEM((tm, tn), jnp.float32)],
        ),
        compiler_params=pltpu.CompilerParams(
            dimension_semantics=("parallel", "parallel", "arbitrary")),
        cost_estimate=pl.CostEstimate(
            flops=2 * M * N * K,
            transcendentals=0,
            bytes_accessed=2 * (M * K + K * N + 2 * M * N) + 12 * N),
    )(x, w, b, residual, gamma, beta)


def _layernorm_kernel(x_ref, g_ref, b_ref, o_ref, *, eps):
    x = x_ref[...].astype(jnp.float32)       # LN statistics in f32
    mu = jnp.mean(x, axis=-1, keepdims=True)
    var = jnp.mean((x - mu) * (x - mu), axis=-1, keepdims=True)
    y = (x - mu) * jax.lax.rsqrt(var + eps)
    o_ref[...] = (y * g_ref[...] + b_ref[...]).astype(o_ref.dtype)


def layernorm(x, gamma, beta, eps=1e-12, out_dtype=jnp.bfloat16):
    """LayerNorm over last dim, tiled over rows.  x: (M, H)."""
    M, H = x.shape
    tm = _pick_tile(M, 1024, 16)
    return pl.pallas_call(
        functools.partial(_layernorm_kernel, eps=eps),
        out_shape=jax.ShapeDtypeStruct((M, H), out_dtype),
        grid=(M // tm,),
        in_specs=[
            pl.BlockSpec((tm, H), lambda i: (i, 0)),
            pl.BlockSpec((1, H), lambda i: (0, 0)),
            pl.BlockSpec((1, H), lambda i: (0, 0)),
        ],
        out_specs=pl.BlockSpec((tm, H), lambda i: (i, 0)),
        compiler_params=pltpu.CompilerParams(
            dimension_semantics=("parallel",)),
    )(x, gamma, beta)


def _attention_kernel(qkv_ref, m_ref, o_ref, *, n_heads, head_dim):
    """All heads of one batch per grid step.  qkv_ref: (1, S, 3H) lane-dense."""
    H = n_heads * head_dim
    S = qkv_ref.shape[1]
    qkv = qkv_ref[0]                                 # (S, 3H) bf16
    # Hoist the mask broadcast out of the head loop (JAX does not CSE
    # broadcast_in_dim; previously re-materialized per head on the VPU).
    mask = jnp.broadcast_to(m_ref[0], (S, S)).astype(jnp.float32)
    scale = 1.0 / math.sqrt(head_dim)

    for h in range(n_heads):         # static, tiny trip count; heads on lane axis
        q = qkv[:, h * head_dim:(h + 1) * head_dim]
        k = qkv[:, H + h * head_dim:H + (h + 1) * head_dim]
        v = qkv[:, 2 * H + h * head_dim:2 * H + (h + 1) * head_dim]
        # Contract on Dh directly (no materialized k.T / XLU transpose); f32 scores.
        s = jax.lax.dot_general(q, k, (((1,), (1,)), ((), ())),
                                preferred_element_type=jnp.float32)
        s = s * scale + mask
        s = s - jnp.max(s, axis=-1, keepdims=True)
        p = jnp.exp(s)
        inv = pl.reciprocal(jnp.sum(p, axis=-1, keepdims=True), approx=False)
        ctx = jnp.dot((p * inv).astype(qkv.dtype), v,
                      preferred_element_type=jnp.float32)
        # Write each head's context straight into its lane slice of the output
        # block (no list + jnp.concatenate relayout, no extra live f32 arrays).
        o_ref[0, :, h * head_dim:(h + 1) * head_dim] = ctx.astype(o_ref.dtype)
    # TODO(synk): for real sizes (Dh=64, long S) batch the per-head contractions
    # (head axis as a dot_general batch dim) and add a flash-style S-tiled online
    # softmax -- mandatory earliest on v7x with its 64 MiB VMEM.


def multihead_attention(qkv, add_mask, n_heads, head_dim, out_dtype=jnp.bfloat16):
    """qkv: (B, S, 3H) fused projections; add_mask: (B, 1, S).  Returns (B, S, H)."""
    B, S, H3 = qkv.shape
    H = n_heads * head_dim
    return pl.pallas_call(
        functools.partial(_attention_kernel, n_heads=n_heads, head_dim=head_dim),
        out_shape=jax.ShapeDtypeStruct((B, S, H), out_dtype),
        grid=(B,),
        in_specs=[
            pl.BlockSpec((1, S, H3), lambda b: (b, 0, 0)),
            pl.BlockSpec((1, 1, S), lambda b: (b, 0, 0)),
        ],
        out_specs=pl.BlockSpec((1, S, H), lambda b: (b, 0, 0)),
        compiler_params=pltpu.CompilerParams(
            dimension_semantics=("parallel",)),
    )(qkv, add_mask)


# ----------------------------- Model (glue) -------------------------------- #

def init_params(key, vocab, max_pos, hidden, n_layers, n_heads, intermediate):
    def nrm(k, shape, scale=0.02, dtype=jnp.float32):
        return (scale * jax.random.normal(k, shape, dtype=jnp.float32)).astype(dtype)

    keys = iter(jax.random.split(key, 16 + n_layers * 16))
    p = {
        "word_emb": nrm(next(keys), (vocab, hidden)),
        "pos_emb": nrm(next(keys), (max_pos, hidden)),
        "type_emb": nrm(next(keys), (2, hidden)),
        "emb_ln_g": jnp.ones((1, hidden), jnp.float32),
        "emb_ln_b": jnp.zeros((1, hidden), jnp.float32),
        "pool_w": nrm(next(keys), (hidden, hidden), dtype=jnp.bfloat16),
        "pool_b": jnp.zeros((1, hidden), jnp.float32),
        "layers": [],
    }
    for _ in range(n_layers):
        wq = nrm(next(keys), (hidden, hidden))
        wk = nrm(next(keys), (hidden, hidden))
        wv = nrm(next(keys), (hidden, hidden))
        lyr = {
            # Fused QKV weights: one (H, 3H) matmul instead of three (H, H).
            "w_qkv": jnp.concatenate([wq, wk, wv], axis=1).astype(jnp.bfloat16),
            "b_qkv": jnp.zeros((1, 3 * hidden), jnp.float32),
            "wo": nrm(next(keys), (hidden, hidden), dtype=jnp.bfloat16),
            "bo": jnp.zeros((1, hidden), jnp.float32),
            "ln1_g": jnp.ones((1, hidden), jnp.float32), "ln1_b": jnp.zeros((1, hidden), jnp.float32),
            "w1": nrm(next(keys), (hidden, intermediate), dtype=jnp.bfloat16),
            "b1": jnp.zeros((1, intermediate), jnp.float32),
            "w2": nrm(next(keys), (intermediate, hidden), dtype=jnp.bfloat16),
            "b2": jnp.zeros((1, hidden), jnp.float32),
            "ln2_g": jnp.ones((1, hidden), jnp.float32), "ln2_b": jnp.zeros((1, hidden), jnp.float32),
        }
        p["layers"].append(lyr)
    return p


def text_encoder_forward(params, input_ids, attention_mask, n_heads):
    """Mirrors TextEncoder.forward: returns pooler_output of shape (B, hidden)."""
    B, S = input_ids.shape
    hidden = params["word_emb"].shape[1]
    Dh = hidden // n_heads

    # Embedding lookups (gather) kept as plain-JAX glue; sum + LN stats in f32.
    word = jnp.take(params["word_emb"], input_ids, axis=0)          # (B, S, H)
    pos = params["pos_emb"][:S][None, :, :]                          # (1, S, H)
    typ = params["type_emb"][0][None, None, :]                       # (1, 1, H)
    x = (word + pos + typ).reshape(B * S, hidden)
    x = layernorm(x, params["emb_ln_g"], params["emb_ln_b"])         # -> bf16 activations

    # Additive attention mask: (B, 1, S), 0 for keep, -1e9 for pad (scores are f32).
    add_mask = (1.0 - attention_mask.astype(jnp.float32))[:, None, :] * jnp.float32(-1e9)

    for lyr in params["layers"]:
        # Fused QKV projection: one pallas_call, x streamed from HBM once.
        qkv = linear(x, lyr["w_qkv"], lyr["b_qkv"])                  # (B*S, 3H) bf16
        ctx = multihead_attention(qkv.reshape(B, S, 3 * hidden),
                                  add_mask, n_heads, Dh)             # (B, S, H) bf16
        # Attention output projection with fused bias + residual + LayerNorm.
        x = linear_res_ln(ctx.reshape(B * S, hidden), lyr["wo"], lyr["bo"],
                          residual=x, gamma=lyr["ln1_g"], beta=lyr["ln1_b"])
        # FFN: up-projection with fused GELU, down-projection with fused res+LN.
        h1 = linear(x, lyr["w1"], lyr["b1"], activation="gelu")
        x = linear_res_ln(h1, lyr["w2"], lyr["b2"],
                          residual=x, gamma=lyr["ln2_g"], beta=lyr["ln2_b"])

    # pooler_output = tanh(Wp @ hidden_state[CLS] + bp)
    cls = x.reshape(B, S, hidden)[:, 0, :]                           # (B, H) bf16
    pooled = linear(cls, params["pool_w"], params["pool_b"],
                    activation="tanh", out_dtype=jnp.float32)
    return pooled
    # TODO(synk): at the toy demo sizes (H=32, S=8) lanes are mostly masked and
    # launch overhead dominates; benchmark only at realistic H/S (H>=768, S>=128).


# --------------------------------- main ------------------------------------ #

if __name__ == "__main__":
    B, S = 2, 8
    VOCAB, MAX_POS = 100, 16
    HIDDEN, N_HEADS, N_LAYERS, INTER = 32, 2, 2, 64

    key = jax.random.PRNGKey(0)
    k_params, k_ids = jax.random.split(key)

    params = init_params(k_params, VOCAB, MAX_POS, HIDDEN, N_LAYERS, N_HEADS, INTER)

    input_ids = jax.random.randint(k_ids, (B, S), 0, VOCAB, dtype=jnp.int32)
    attention_mask = jnp.ones((B, S), dtype=jnp.int32).at[1, 6:].set(0)  # pad tail of row 1

    pooler_output = text_encoder_forward(params, input_ids, attention_mask, N_HEADS)
    pooler_output = jax.block_until_ready(pooler_output)

    assert pooler_output.shape == (B, HIDDEN)
    assert bool(jnp.all(jnp.isfinite(pooler_output)))
    print("KERNEL_OK")
</pallas_src>

<mosaic_0001>
module attributes {stable_mosaic.version = 11 : i64} {
  func.func @_layernorm_kernel(%arg0: i32, %arg1: memref<16x32xf32, #tpu.memory_space<vmem>>, %arg2: memref<1x32xf32, #tpu.memory_space<vmem>>, %arg3: memref<1x32xf32, #tpu.memory_space<vmem>>, %arg4: memref<16x32xbf16, #tpu.memory_space<vmem>>) attributes {dimension_semantics = [#tpu.dimension_semantics<parallel>], iteration_bounds = array<i64: 1>, scalar_prefetch = 0 : i64, scratch_operands = 0 : i64, tpu.core_type = #tpu.core_type<tc>, window_params = [{transform_indices = @transform_0, window_bounds = array<i64: 16, 32>}, {pipeline_mode = #tpu.pipeline_mode<synchronous>, transform_indices = @transform_1, window_bounds = array<i64: 1, 32>}, {pipeline_mode = #tpu.pipeline_mode<synchronous>, transform_indices = @transform_2, window_bounds = array<i64: 1, 32>}, {transform_indices = @transform_3, window_bounds = array<i64: 16, 32>}]} {
    %c0 = arith.constant 0 : index
    %c0_0 = arith.constant 0 : index
    %0 = vector.load %arg1[%c0, %c0_0] : memref<16x32xf32, #tpu.memory_space<vmem>>, vector<16x32xf32>
    %cst = arith.constant dense<0.000000e+00> : vector<16xf32>
    %1 = vector.multi_reduction <add>, %0, %cst [1] : vector<16x32xf32> to vector<16xf32>
    %2 = vector.shape_cast %1 : vector<16xf32> to vector<16x1xf32>
    %cst_1 = arith.constant 3.200000e+01 : f32
    %3 = vector.broadcast %cst_1 : f32 to vector<16x1xf32>
    %4 = arith.divf %2, %3 : vector<16x1xf32>
    %5 = vector.broadcast %4 : vector<16x1xf32> to vector<16x32xf32>
    %6 = arith.subf %0, %5 : vector<16x32xf32>
    %7 = vector.broadcast %4 : vector<16x1xf32> to vector<16x32xf32>
    %8 = arith.subf %0, %7 : vector<16x32xf32>
    %9 = arith.mulf %6, %8 : vector<16x32xf32>
    %cst_2 = arith.constant dense<0.000000e+00> : vector<16xf32>
    %10 = vector.multi_reduction <add>, %9, %cst_2 [1] : vector<16x32xf32> to vector<16xf32>
    %11 = vector.shape_cast %10 : vector<16xf32> to vector<16x1xf32>
    %cst_3 = arith.constant 3.200000e+01 : f32
    %12 = vector.broadcast %cst_3 : f32 to vector<16x1xf32>
    %13 = arith.divf %11, %12 : vector<16x1xf32>
    %14 = vector.broadcast %4 : vector<16x1xf32> to vector<16x32xf32>
    %15 = arith.subf %0, %14 : vector<16x32xf32>
    %cst_4 = arith.constant 9.99999996E-13 : f32
    %16 = vector.broadcast %cst_4 : f32 to vector<16x1xf32>
    %17 = arith.addf %13, %16 : vector<16x1xf32>
    %18 = math.rsqrt %17 : vector<16x1xf32>
    %19 = vector.broadcast %18 : vector<16x1xf32> to vector<16x32xf32>
    %20 = arith.mulf %15, %19 : vector<16x32xf32>
    %c0_5 = arith.constant 0 : index
    %c0_6 = arith.constant 0 : index
    %21 = vector.load %arg2[%c0_5, %c0_6] : memref<1x32xf32, #tpu.memory_space<vmem>>, vector<1x32xf32>
    %22 = vector.broadcast %21 : vector<1x32xf32> to vector<16x32xf32>
    %23 = arith.mulf %20, %22 : vector<16x32xf32>
    %c0_7 = arith.constant 0 : index
    %c0_8 = arith.constant 0 : index
    %24 = vector.load %arg3[%c0_7, %c0_8] : memref<1x32xf32, #tpu.memory_space<vmem>>, vector<1x32xf32>
    %25 = vector.broadcast %24 : vector<1x32xf32> to vector<16x32xf32>
    %26 = arith.addf %23, %25 : vector<16x32xf32>
    %27 = arith.truncf %26 : vector<16x32xf32> to vector<16x32xbf16>
    %c0_9 = arith.constant 0 : index
    %c0_10 = arith.constant 0 : index
    %28 = vector.load %arg4[%c0_9, %c0_10] : memref<16x32xbf16, #tpu.memory_space<vmem>>, vector<16x32xbf16>
    tpu.vector_store %arg4[%c0_9, %c0_10], %27 {strides = array<i32>} : memref<16x32xbf16, #tpu.memory_space<vmem>>, vector<16x32xbf16>,
    return
  }
  func.func @transform_0(%arg0: i32) -> (i32, i32) {
    %c0_i32 = arith.constant 0 : i32
    %c0_i32_0 = arith.constant 0 : i32
    return %arg0, %c0_i32 : i32, i32
  }
  func.func @transform_1(%arg0: i32) -> (i32, i32) {
    %c0_i32 = arith.constant 0 : i32
    %c0_i32_0 = arith.constant 0 : i32
    %c0_i32_1 = arith.constant 0 : i32
    return %c0_i32, %c0_i32_0 : i32, i32
  }
  func.func @transform_2(%arg0: i32) -> (i32, i32) {
    %c0_i32 = arith.constant 0 : i32
    %c0_i32_0 = arith.constant 0 : i32
    %c0_i32_1 = arith.constant 0 : i32
    return %c0_i32, %c0_i32_0 : i32, i32
  }
  func.func @transform_3(%arg0: i32) -> (i32, i32) {
    %c0_i32 = arith.constant 0 : i32
    %c0_i32_0 = arith.constant 0 : i32
    return %arg0, %c0_i32 : i32, i32
  }
}

</mosaic_0001>

<llo_original>
// kernel: tpu_custom_call.1
$region0: #{tpu_custom_call.1}
  #allocation0 [shape = 'u32[]', space=smem, size = 0x4, offset = 0x4, fixed_abs, tag = 'smem constant byte address 0x4 - core index']
  #allocation1 [shape = 'u32[144,128]{1,0:T(1,128)}', space=vmem, size = 0x12000, scoped, tag = 'internal scratch']
  %s0 = inlined_call_operand.hbm [shape: f32[16,32], index: 0, kind: input, shape index: {}]
  %s1 = inlined_call_operand.vmem [shape: f32[1,32], index: 1, kind: input, shape index: {}]
  %s2 = inlined_call_operand.vmem [shape: f32[1,32], index: 2, kind: input, shape index: {}]
  %s3 = inlined_call_operand.hbm [shape: bf16[16,32], index: 3, kind: output, shape index: {}]
  %s4 = sld [smem:[#allocation0]]
  $region26: #{tpu_custom_call.1} parent=0
    _
  %s6 = ssub.s32 1, %s4
  %s7 = scalar_select 0, %s6, %s4
  $region1: #{tpu_custom_call.1} parent=0
    #allocation2 [shape = 'u8[8192]{0}', space=vmem, size = 0x2000, scoped, tag = 'input window, operand 0, single buffered']
    #allocation3 [shape = 's32[1]{0}', space=sflag, size = 0x4, scoped, tag = 'scoped memory for tpu_custom_call.1']
    #allocation4 [shape = 's32[1]{0}', space=sflag, size = 0x4, scoped, tag = 'scoped memory for tpu_custom_call.1']
    #allocation5 [shape = 'u8[4096]{0}', space=vmem, size = 0x1000, scoped, tag = 'output window, operand 0, single buffered']
    %8 = vsyncpa [#allocation3], 0
    %9 = vsyncpa [#allocation4], 0
    // Predicated region
    $region2: #{tpu_custom_call.1} parent=1 // pred_check
      _
    $region3: #{tpu_custom_call.1} parent=1 // pred_check_branch
      %11 = sbr.rel (0) target = $region5
    $region4: #{tpu_custom_call.1} parent=1 // pred_region
      %s13 = ssub.s32 256, 256
      %14 = vsyncadd [#allocation3], %s13
      %s15 = sshll.u32 [#allocation2], 4
      %s16 = int_to_ptr.vmem [resolvable:$true] %s15
      %21 = dma.hbm_to_vmem [thread:$0]  %s0, 256, %s16, [#allocation3], 128, 128, 8
    $region5: #{tpu_custom_call.1} parent=1 // pred_fallthru
      _
    // Predicated region
    $region6: #{tpu_custom_call.1} parent=1 // pred_check
      _
    $region7: #{tpu_custom_call.1} parent=1 // pred_check_branch
      %23 = sbr.rel (0) target = $region9
    $region8: #{tpu_custom_call.1} parent=1 // pred_region
      _
    $region9: #{tpu_custom_call.1} parent=1 // pred_fallthru
      _
    // Predicated region
    $region10: #{tpu_custom_call.1} parent=1 // pred_check
      _
    $region11: #{tpu_custom_call.1} parent=1 // pred_check_branch
      %25 = sbr.rel (0) target = $region13
    $region12: #{tpu_custom_call.1} parent=1 // pred_region
      _
    $region13: #{tpu_custom_call.1} parent=1 // pred_fallthru
      _
    // Predicated region
    $region14: #{tpu_custom_call.1} parent=1 // pred_check
      _
    $region15: #{tpu_custom_call.1} parent=1 // pred_check_branch
      %27 = sbr.rel (0) target = $region17
    $region16: #{tpu_custom_call.1} parent=1 // pred_region
      %28 = dma.done [#allocation3], 256
    $region17: #{tpu_custom_call.1} parent=1 // pred_fallthru
      _
    %v29 = vld [vmem:[#allocation2] sm:$0xff]
    %v30 = vld [vmem:[#allocation2 + $0x8] sm:$0xff]
    %vm31 = vcmask 261120
    %v32 = vsel %vm31, %v29, 0.0
    %33 = vadd.xlane.f32.xlu0 %v32
    %v34 = vpop.xlane.xlu0 %33
    %v35 = vsel %vm31, %v30, 0.0
    %36 = vadd.xlane.f32.xlu0 %v35
    %v37 = vpop.xlane.xlu0 %36
    %v38 = vrcp.pop 32.0
    %v39 = vmul.f32 %v34, %v38
    %v40 = vmul.f32 %v37, %v38
    %v41 = vsub.f32 %v29, %v39
    %v42 = vsub.f32 %v30, %v40
    %v43 = vmul.f32 %v41, %v41
    %v44 = vmul.f32 %v42, %v42
    %v45 = vsel %vm31, %v43, 0.0
    %46 = vadd.xlane.f32.xlu0 %v45
    %v47 = vpop.xlane.xlu0 %46
    %v48 = vsel %vm31, %v44, 0.0
    %49 = vadd.xlane.f32.xlu0 %v48
    %v50 = vpop.xlane.xlu0 %49
    %v51 = vmul.f32 %v47, %v38
    %v52 = vmul.f32 %v50, %v38
    %v53 = vadd.f32 %v51, 1e-12
    %v54 = vadd.f32 %v52, 1e-12
    %v55 = vrsqrt.pop %v53
    %v56 = vrsqrt.pop %v54
    %v57 = vmul.f32 %v41, %v55
    %v58 = vmul.f32 %v42, %v56
    %v59 = vld [vmem:[%s1] sm:$0x1]
    %v61 = vlaneseq
    %v62 = vshrl.u32 %v61, 7
    %v63 = vsub.s32 0, %v62
    %v64 = vrot.slane %v59, %v63
    %v66 = vmul.f32 %v57, %v64
    %v67 = vmul.f32 %v58, %v64
    %v68 = vld [vmem:[%s2] sm:$0x1]
    %v70 = vlaneseq
    %v71 = vshrl.u32 %v70, 7
    %v72 = vsub.s32 0, %v71
    %v73 = vrot.slane %v68, %v72
    %v75 = vadd.f32 %v66, %v73
    %v76 = vadd.f32 %v67, %v73
    %v77 = vpack.c.bf16 %v76, %v75
    %v79 = vunpack.c.l.b16 %v77
    %v80 = vunpack.c.h.b16 %v77
    %v81 = vpack.c.b16 %v79, %v79
    %v82 = vpack.c.b16 %v80, %v80
    %vm85 = vcmask 257024
    %86 = vst.msk [vmem:[#allocation5] sm:$0xf] %vm85, %v81
    %87 = vst.msk [vmem:[#allocation5 + $0x4] sm:$0xf] %vm85, %v82
    // Predicated region
    $region18: #{tpu_custom_call.1} parent=1 // pred_check
      _
    $region19: #{tpu_custom_call.1} parent=1 // pred_check_branch
      %89 = sbr.rel (0) target = $region21
    $region20: #{tpu_custom_call.1} parent=1 // pred_region
      %s91 = ssub.s32 128, 128
      %92 = vsyncadd [#allocation4], %s91
      %s93 = sshll.u32 [#allocation5], 4
      %s94 = int_to_ptr.vmem [resolvable:$true] %s93
      %99 = dma.vmem_to_hbm [thread:$0]  %s94, 128, %s3, [#allocation4], 64, 64, 4
    $region21: #{tpu_custom_call.1} parent=1 // pred_fallthru
      _
    // Predicated region
    $region22: #{tpu_custom_call.1} parent=1 // pred_check
      _
    $region23: #{tpu_custom_call.1} parent=1 // pred_check_branch
      %101 = sbr.rel (0) target = $region25
    $region24: #{tpu_custom_call.1} parent=1 // pred_region
      %102 = dma.done [#allocation4], 128
    $region25: #{tpu_custom_call.1} parent=1 // pred_fallthru
      _
    %103 = vsyncpa [#allocation3], 1
    %104 = vsyncpa [#allocation4], 1

</llo_original>
